<compile_context>
chip_gen: v7x
topology: tpu7x:2x2x1
jax: 0.10.0
libtpu: 0.0.40
codegen_flags: <defaults>
</compile_context>

<pallas_src>
import functools
import math

import jax
import jax.numpy as jnp
from jax.experimental import pallas as pl
from jax.experimental.pallas import tpu as pltpu


# ----------------------------------------------------------------------------
# Kernel
# ----------------------------------------------------------------------------
def fused_attn_kernel(g_ref, kt_ref, wqv_ref, bqv_ref, o_ref, *,
                      scale_over_temp, hid_p):
    kt = kt_ref[...]            # (N, hid_p) bf16: pre-normalized keys, transposed
    wqv = wqv_ref[...]          # (hid_p + C_p, C_p) f32: fused query+value weights
    bqv = bqv_ref[...]          # (hid_p + C_p, 1)   f32: fused bias (v rows are 0)

    for b in range(g_ref.shape[0]):          # static unroll over the batch block
        g_cf = g_ref[b]                       # (C_p, N) channel-first, lane-dense

        # Fused main_query + main_dynamics projection: one MXU push for both.
        qv = jnp.dot(wqv, g_cf, preferred_element_type=jnp.float32) + bqv
        q = qv[:hid_p, :]                     # (hid_p, N)
        v = qv[hid_p:, :]                     # (C_p, N)

        # F.normalize(p=2) over channels and scale/temp folded into ONE per-column
        # scale of q:  x * rsqrt(max(||x||^2, eps^2)) == x / max(||x||, eps).
        q = q * (scale_over_temp * jax.lax.rsqrt(
            jnp.maximum(jnp.sum(q * q, axis=0, keepdims=True), 1e-24)))

        # energy^T[m, n] = k_hat[m, :] . q_hat[:, n]   -> (keys, queries)
        # Standard (N,hid)@(hid,N) matmul, bf16 operands, f32 accumulation.
        energy_t = jnp.dot(kt, q.astype(jnp.bfloat16),
                           preferred_element_type=jnp.float32)

        # softmax over keys (dim 0); reciprocal on the EUP slot.
        mx = jnp.max(energy_t, axis=0, keepdims=True)
        e = jnp.exp(energy_t - mx)
        attn_t = e * pl.reciprocal(jnp.sum(e, axis=0, keepdims=True), approx=True)

        # out[c, n] = sum_m v[c, m] * attn^T[m, n] -- standard matmul, lane-dense store.
        o_ref[b] = jnp.dot(v.astype(jnp.bfloat16), attn_t.astype(jnp.bfloat16),
                           preferred_element_type=jnp.float32)


# ----------------------------------------------------------------------------
# One-time preparation of batch-invariant pieces (run once at init)
# ----------------------------------------------------------------------------
def _round_up(x, m):
    return ((x + m - 1) // m) * m


def prepare_attention(params, pe):
    """Precompute the key branch and the fused/padded weights (batch invariant)."""
    w1, b1, w2, b2, w3, b3, wq, bq, wv = params
    hid, C = wq.shape
    N = pe.shape[1]
    hid_p = _round_up(hid, 16)      # bf16-friendly sublane multiple
    C_p = _round_up(C, 8)

    # Batch-invariant key branch: 1x1-conv MLP over the positional encoding,
    # then F.normalize(p=2) over the channel dim.  Done once, plain XLA.
    k = jnp.maximum(w1 @ pe + b1, 0.0)
    k = jnp.maximum(w2 @ k + b2, 0.0)
    k = w3 @ k + b3
    k = k * jax.lax.rsqrt(jnp.maximum(jnp.sum(k * k, axis=0, keepdims=True), 1e-24))
    k_t = jnp.zeros((N, hid_p), jnp.float32).at[:, :hid].set(k.T)
    k_t = k_t.astype(jnp.bfloat16)                                  # (N, hid_p) bf16

    # Fused main_query + main_dynamics weights (shared LHS g, K = C).
    wqv = jnp.zeros((hid_p + C_p, C_p), jnp.float32)
    wqv = wqv.at[:hid, :C].set(wq).at[hid_p:hid_p + C, :C].set(wv)
    bqv = jnp.zeros((hid_p + C_p, 1), jnp.float32).at[:hid, :].set(bq)

    return dict(k_t=k_t, wqv=wqv, bqv=bqv,
                hid=hid, hid_p=hid_p, C=C, C_p=C_p, N=N,
                scale=float(hid) ** (-0.5))      # scale uses the TRUE hidden dim


# ----------------------------------------------------------------------------
# Wrapper
# ----------------------------------------------------------------------------
def attentive_dynamics(g, prep, *, temp=1.0, batch_block=None):
    """g: (bs, C, H, W) float32 -> (bs, C, H, W) float32."""
    bs, C, H, W = g.shape
    N = H * W
    assert C == prep["C"] and N == prep["N"]
    C_p, hid_p = prep["C_p"], prep["hid_p"]

    if batch_block is None:
        # Keep >=2 grid entries so v7x's two TensorCores both get work; on single-TC
        # v5e/v6e callers may pass batch_block=bs to fold everything into one step.
        batch_block = bs // 2 if (bs >= 2 and bs % 2 == 0) else 1
    assert bs % batch_block == 0
    grid = (bs // batch_block,)

    # Channel-first layout is the natural reshape of g -- no host transpose needed.
    g_cf = g.reshape(bs, C, N)
    if C_p != C:
        g_cf = jnp.pad(g_cf, ((0, 0), (0, C_p - C), (0, 0)))        # inert zero pad

    scale_over_temp = prep["scale"] / float(temp)
    kern = functools.partial(fused_attn_kernel,
                             scale_over_temp=scale_over_temp, hid_p=hid_p)

    out = pl.pallas_call(
        kern,
        out_shape=jax.ShapeDtypeStruct((bs, C_p, N), jnp.float32),
        grid_spec=pltpu.PrefetchScalarGridSpec(
            num_scalar_prefetch=0,
            grid=grid,
            in_specs=[
                pl.BlockSpec((batch_block, C_p, N), lambda i: (i, 0, 0)),  # g (CF)
                pl.BlockSpec((N, hid_p), lambda i: (0, 0)),                # k^T bf16
                pl.BlockSpec((hid_p + C_p, C_p), lambda i: (0, 0)),        # fused W_qv
                pl.BlockSpec((hid_p + C_p, 1), lambda i: (0, 0)),          # fused bias
            ],
            out_specs=pl.BlockSpec((batch_block, C_p, N), lambda i: (i, 0, 0)),
        ),
        compiler_params=pltpu.CompilerParams(
            dimension_semantics=("parallel",)),
    )(g_cf, prep["k_t"], prep["wqv"], prep["bqv"])

    # Output is already channel-first and lane-dense: slice + reshape only.
    return out[:, :C, :].reshape(bs, C, H, W)


# ----------------------------------------------------------------------------
# Parameter / positional-encoding construction (glue, plain JAX)
# ----------------------------------------------------------------------------
def make_nerf_pe(H, W, num_freq):
    """NeRF-style sin/cos encoding of a [-1,1]^2 coord grid -> (pe_dim, H*W)."""
    ys = (jnp.arange(H, dtype=jnp.float32) / max(H - 1, 1)) * 2.0 - 1.0
    xs = (jnp.arange(W, dtype=jnp.float32) / max(W - 1, 1)) * 2.0 - 1.0
    yy, xx = jnp.meshgrid(ys, xs, indexing="ij")
    coords = jnp.stack([yy, xx], axis=0)                  # (2, H, W)
    feats = [coords]
    for i in range(num_freq):
        for j in range(2):
            c = coords[j]
            feats.append(jnp.sin((2.0 ** i) * jnp.pi * c)[None])
            feats.append(jnp.cos((2.0 ** i) * jnp.pi * c)[None])
    pe = jnp.concatenate(feats, axis=0)                   # (pe_dim, H, W)
    return pe.reshape(pe.shape[0], H * W).astype(jnp.float32)


def init_params(key, pe_dim, g_dim, hidden):
    ks = jax.random.split(key, 9)

    def w(k, shape, fan_in):
        return jax.random.normal(k, shape, jnp.float32) / math.sqrt(fan_in)

    w1 = w(ks[0], (hidden, pe_dim), pe_dim)
    b1 = 0.01 * jax.random.normal(ks[1], (hidden, 1), jnp.float32)
    w2 = w(ks[2], (hidden, hidden), hidden)
    b2 = 0.01 * jax.random.normal(ks[3], (hidden, 1), jnp.float32)
    w3 = w(ks[4], (hidden, hidden), hidden)
    b3 = 0.01 * jax.random.normal(ks[5], (hidden, 1), jnp.float32)
    wq = w(ks[6], (hidden, g_dim), g_dim)
    bq = 0.01 * jax.random.normal(ks[7], (hidden, 1), jnp.float32)
    wv = w(ks[8], (g_dim, g_dim), g_dim)          # main_dynamics, bias=False
    return (w1, b1, w2, b2, w3, b3, wq, bq, wv)


def ref_forward(g, pe, params, *, temp=1.0):
    """Pure-JAX reference mirroring the PyTorch forward."""
    w1, b1, w2, b2, w3, b3, wq, bq, wv = params
    bs, C, H, W = g.shape
    N = H * W
    hidden = wq.shape[0]
    scale = float(hidden) ** (-0.5)
    gf = g.reshape(bs, C, N)

    k = jnp.maximum(w1 @ pe + b1, 0.0)
    k = jnp.maximum(w2 @ k + b2, 0.0)
    k = w3 @ k + b3
    k = k / jnp.maximum(jnp.linalg.norm(k, axis=0, keepdims=True), 1e-12)

    q = jnp.einsum("hc,bcn->bhn", wq, gf) + bq[None]
    q = q / jnp.maximum(jnp.linalg.norm(q, axis=1, keepdims=True), 1e-12)
    v = jnp.einsum("dc,bcn->bdn", wv, gf)

    energy = jnp.einsum("bcn,cm->bnm", q, k) * scale
    attn = jax.nn.softmax(energy / temp, axis=-1)
    out = jnp.einsum("bcm,bnm->bcn", v, attn)
    return out.reshape(bs, C, H, W)


# ----------------------------------------------------------------------------
if __name__ == "__main__":
    bs, g_dim, H, W = 2, 4, 16, 16
    hidden = 50
    num_freq = 4
    pe_dim = 2 + 4 * num_freq          # 18
    temp = 1.0

    key = jax.random.PRNGKey(0)
    kg, kp = jax.random.split(key)
    g = jax.random.normal(kg, (bs, g_dim, H, W), jnp.float32)
    pe = make_nerf_pe(H, W, num_freq)
    params = init_params(kp, pe_dim, g_dim, hidden)

    prep = prepare_attention(params, pe)        # one-time init (key branch + padding)
    out = attentive_dynamics(g, prep, temp=temp)
    out = jax.block_until_ready(out)

    ref = jax.block_until_ready(ref_forward(g, pe, params, temp=temp))
    assert out.shape == (bs, g_dim, H, W)
    # Tolerance covers bf16 MXU operands (f32 accumulation) + approx softmax reciprocal.
    assert jnp.allclose(out, ref, atol=3e-3, rtol=3e-3), (
        float(jnp.max(jnp.abs(out - ref))))

    print("KERNEL_OK")
</pallas_src>

<mosaic_0001>
module attributes {stable_mosaic.version = 11 : i64} {
  func.func @fused_attn_kernel(%arg0: i32, %arg1: memref<1x8x256xf32, #tpu.memory_space<vmem>>, %arg2: memref<256x64xbf16, #tpu.memory_space<vmem>>, %arg3: memref<72x8xf32, #tpu.memory_space<vmem>>, %arg4: memref<72x1xf32, #tpu.memory_space<vmem>>, %arg5: memref<1x8x256xf32, #tpu.memory_space<vmem>>) attributes {dimension_semantics = [#tpu.dimension_semantics<parallel>], iteration_bounds = array<i64: 2>, scalar_prefetch = 0 : i64, scratch_operands = 0 : i64, tpu.core_type = #tpu.core_type<tc>, window_params = [{transform_indices = @transform_0, window_bounds = array<i64: 1, 8, 256>}, {pipeline_mode = #tpu.pipeline_mode<synchronous>, transform_indices = @transform_1, window_bounds = array<i64: 256, 64>}, {pipeline_mode = #tpu.pipeline_mode<synchronous>, transform_indices = @transform_2, window_bounds = array<i64: 72, 8>}, {pipeline_mode = #tpu.pipeline_mode<synchronous>, transform_indices = @transform_3, window_bounds = array<i64: 72, 1>}, {transform_indices = @transform_4, window_bounds = array<i64: 1, 8, 256>}]} {
    %c0 = arith.constant 0 : index
    %c0_0 = arith.constant 0 : index
    %0 = vector.load %arg2[%c0, %c0_0] : memref<256x64xbf16, #tpu.memory_space<vmem>>, vector<256x64xbf16>
    %c0_1 = arith.constant 0 : index
    %c0_2 = arith.constant 0 : index
    %1 = vector.load %arg3[%c0_1, %c0_2] : memref<72x8xf32, #tpu.memory_space<vmem>>, vector<72x8xf32>
    %c0_3 = arith.constant 0 : index
    %c0_4 = arith.constant 0 : index
    %2 = vector.load %arg4[%c0_3, %c0_4] : memref<72x1xf32, #tpu.memory_space<vmem>>, vector<72x1xf32>
    %c0_5 = arith.constant 0 : index
    %c0_6 = arith.constant 0 : index
    %c0_7 = arith.constant 0 : index
    %3 = vector.load %arg1[%c0_5, %c0_6, %c0_7] : memref<1x8x256xf32, #tpu.memory_space<vmem>>, vector<1x8x256xf32>
    %4 = vector.shape_cast %3 : vector<1x8x256xf32> to vector<8x256xf32>
    %cst = arith.constant dense<0.000000e+00> : vector<72x256xf32>
    %5 = tpu.matmul %1, %4, %cst {dimension_numbers = #tpu.dot_dimension_numbers<[1], [0], [0], [1], [0, 0, 1, 1], [], []>} : vector<72x8xf32>, vector<8x256xf32>, vector<72x256xf32> -> vector<72x256xf32>
    %6 = vector.broadcast %2 : vector<72x1xf32> to vector<72x256xf32>
    %7 = arith.addf %5, %6 : vector<72x256xf32>
    %8 = vector.extract_strided_slice %7 {offsets = [0, 0], sizes = [64, 256], strides = [1, 1]} : vector<72x256xf32> to vector<64x256xf32>
    %9 = vector.extract_strided_slice %7 {offsets = [64, 0], sizes = [8, 256], strides = [1, 1]} : vector<72x256xf32> to vector<8x256xf32>
    %10 = arith.mulf %8, %8 : vector<64x256xf32>
    %cst_8 = arith.constant dense<0.000000e+00> : vector<256xf32>
    %11 = vector.multi_reduction <add>, %10, %cst_8 [0] : vector<64x256xf32> to vector<256xf32>
    %12 = vector.shape_cast %11 : vector<256xf32> to vector<1x256xf32>
    %cst_9 = arith.constant 1.000000e-24 : f32
    %13 = vector.broadcast %cst_9 : f32 to vector<1x256xf32>
    %14 = arith.maximumf %12, %13 : vector<1x256xf32>
    %15 = math.rsqrt %14 : vector<1x256xf32>
    %cst_10 = arith.constant 0.141421363 : f32
    %16 = vector.broadcast %cst_10 : f32 to vector<1x256xf32>
    %17 = arith.mulf %16, %15 : vector<1x256xf32>
    %18 = vector.broadcast %17 : vector<1x256xf32> to vector<64x256xf32>
    %19 = arith.mulf %8, %18 : vector<64x256xf32>
    %20 = arith.truncf %19 : vector<64x256xf32> to vector<64x256xbf16>
    %cst_11 = arith.constant dense<0.000000e+00> : vector<256x256xf32>
    %21 = tpu.matmul %0, %20, %cst_11 {dimension_numbers = #tpu.dot_dimension_numbers<[1], [0], [0], [1], [0, 0, 1, 1], [], []>} : vector<256x64xbf16>, vector<64x256xbf16>, vector<256x256xf32> -> vector<256x256xf32>
    %cst_12 = arith.constant dense<0xFF800000> : vector<256xf32>
    %22 = vector.multi_reduction <maximumf>, %21, %cst_12 [0] : vector<256x256xf32> to vector<256xf32>
    %23 = vector.shape_cast %22 : vector<256xf32> to vector<1x256xf32>
    %24 = vector.broadcast %23 : vector<1x256xf32> to vector<256x256xf32>
    %25 = arith.subf %21, %24 : vector<256x256xf32>
    %26 = math.exp %25 : vector<256x256xf32>
    %cst_13 = arith.constant dense<0.000000e+00> : vector<256xf32>
    %27 = vector.multi_reduction <add>, %26, %cst_13 [0] : vector<256x256xf32> to vector<256xf32>
    %28 = vector.shape_cast %27 : vector<256xf32> to vector<1x256xf32>
    %29 = tpu.reciprocal %28 {approx = true} : vector<1x256xf32> -> vector<1x256xf32>
    %30 = vector.broadcast %29 : vector<1x256xf32> to vector<256x256xf32>
    %31 = arith.mulf %26, %30 : vector<256x256xf32>
    %32 = arith.truncf %9 : vector<8x256xf32> to vector<8x256xbf16>
    %33 = arith.truncf %31 : vector<256x256xf32> to vector<256x256xbf16>
    %cst_14 = arith.constant dense<0.000000e+00> : vector<8x256xf32>
    %34 = tpu.matmul %32, %33, %cst_14 {dimension_numbers = #tpu.dot_dimension_numbers<[1], [0], [0], [1], [0, 0, 1, 1], [], []>} : vector<8x256xbf16>, vector<256x256xbf16>, vector<8x256xf32> -> vector<8x256xf32>
    %c0_15 = arith.constant 0 : index
    %c0_16 = arith.constant 0 : index
    %c0_17 = arith.constant 0 : index
    %35 = vector.load %arg5[%c0_15, %c0_16, %c0_17] : memref<1x8x256xf32, #tpu.memory_space<vmem>>, vector<1x8x256xf32>
    %36 = vector.shape_cast %35 : vector<1x8x256xf32> to vector<8x256xf32>
    %37 = vector.shape_cast %34 : vector<8x256xf32> to vector<1x8x256xf32>
    tpu.vector_store %arg5[%c0_15, %c0_16, %c0_17], %37 {strides = array<i32>} : memref<1x8x256xf32, #tpu.memory_space<vmem>>, vector<1x8x256xf32>,
    return
  }
  func.func @transform_0(%arg0: i32) -> (i32, i32, i32) {
    %c0_i32 = arith.constant 0 : i32
    %c0_i32_0 = arith.constant 0 : i32
    %c0_i32_1 = arith.constant 0 : i32
    return %arg0, %c0_i32, %c0_i32_0 : i32, i32, i32
  }
  func.func @transform_1(%arg0: i32) -> (i32, i32) {
    %c0_i32 = arith.constant 0 : i32
    %c0_i32_0 = arith.constant 0 : i32
    %c0_i32_1 = arith.constant 0 : i32
    return %c0_i32, %c0_i32_0 : i32, i32
  }
  func.func @transform_2(%arg0: i32) -> (i32, i32) {
    %c0_i32 = arith.constant 0 : i32
    %c0_i32_0 = arith.constant 0 : i32
    %c0_i32_1 = arith.constant 0 : i32
    return %c0_i32, %c0_i32_0 : i32, i32
  }
  func.func @transform_3(%arg0: i32) -> (i32, i32) {
    %c0_i32 = arith.constant 0 : i32
    %c0_i32_0 = arith.constant 0 : i32
    %c0_i32_1 = arith.constant 0 : i32
    return %c0_i32, %c0_i32_0 : i32, i32
  }
  func.func @transform_4(%arg0: i32) -> (i32, i32, i32) {
    %c0_i32 = arith.constant 0 : i32
    %c0_i32_0 = arith.constant 0 : i32
    %c0_i32_1 = arith.constant 0 : i32
    return %arg0, %c0_i32, %c0_i32_0 : i32, i32, i32
  }
}

</mosaic_0001>

<llo_original>
// kernel: tpu_custom_call.1
$region0: #{tpu_custom_call.1}
  #allocation0 [shape = 'u32[]', space=smem, size = 0x4, offset = 0x4, fixed_abs, tag = 'smem constant byte address 0x4 - core index']
  #allocation1 [shape = 'u32[144,128]{1,0:T(1,128)}', space=vmem, size = 0x12000, scoped, tag = 'internal scratch']
  %s0 = inlined_call_operand.vmem [shape: f32[2,8,256], index: 0, kind: input, shape index: {}]
  %s1 = inlined_call_operand.vmem [shape: bf16[256,64], index: 1, kind: input, shape index: {}]
  %s2 = inlined_call_operand.vmem [shape: f32[72,8], index: 2, kind: input, shape index: {}]
  %s3 = inlined_call_operand.vmem [shape: f32[72,1], index: 3, kind: input, shape index: {}]
  %s4 = inlined_call_operand.hbm [shape: f32[2,8,256], index: 4, kind: output, shape index: {}]
  %s5 = sld [smem:[#allocation0]]
  $region49: #{tpu_custom_call.1} parent=0
    _
  %s7 = ssub.s32 1, %s5
  %s8 = scalar_select 0, %s7, %s5
  $region1: #{tpu_custom_call.1} parent=0
    #allocation2 [shape = 'u8[16384]{0}', space=vmem, size = 0x4000, scoped, tag = 'output window, operand 0']
    #allocation3 [shape = 's32[2]{0}', space=sflag, size = 0x8, scoped, tag = 'scoped memory for tpu_custom_call.1']
    %9 = vsyncpa [#allocation3], 0
    %s10 = scalar_lea.sflag [#allocation3], 1
    %11 = vsyncpa %s10, 0
    loop: start=0, step=1, limit=4
    $region2: #{tpu_custom_call.1} parent=1 // loop_pre_header
      _
    $region3: #{tpu_custom_call.1} parent=1 // loop_header
      %s13 = sphi 0, %s17
      %p14 = scmp.ge.s32.totalorder %s13, 4
      %s23 = sphi 0, %s25
      %s26 = sphi 0, %s23
      %s27 = sphi 0, %s26
      %s43 = sphi 0, %s27
      %s47 = sphi 0, %s47
      %s49 = sphi 0, %s47
      %s50 = sphi 0, %s49
      %s64 = sphi 0, %s50
      %s68 = sphi 0, %s68
      %s70 = sphi 0, %s68
      %s71 = sphi 0, %s70
      %s85 = sphi 0, %s71
      %s89 = sphi 0, %s89
      %s91 = sphi 0, %s89
      %s92 = sphi 0, %s91
      %s106 = sphi 0, %s92
      %s112 = sphi 0, %s114
      %s115 = sphi 0, %s112
      %s116 = sphi 0, %s115
      %s132 = sphi 0, %s116
    $region4: #{tpu_custom_call.1} parent=1 // loop_header_branch
      %16 = sbr.rel (%p14) target = $region8
    $region5: #{tpu_custom_call.1} parent=1 // loop_body
      %s18 = ssub.s32 %s13, 1
      %s19 = ssub.s32 %s13, 2
      %s20 = sadd.s32 %s13, 1
      %s21 = ssub.s32 %s13, %s20
      %p22 = scmp.eq.s32.totalorder %s21, 0
      %s24 = sadd.s32 %s23, 1
      %s25 = scalar_select %p22, %s23, %s24
      %p28 = pneg %p22
      %p29 = scmp.eq.s32.totalorder %s13, 1
      %p30 = por %p28, %p29
      %p31 = scmp.ne.s32.totalorder %s23, %s26
      %p32 = scmp.eq.s32.totalorder %s13, 0
      %p33 = por %p31, %p32
      %p34 = scmp.ne.s32.totalorder %s23, %s26
      %p35 = scmp.eq.s32.totalorder %s18, 1
      %p36 = por %p34, %p35
      %p37 = scmp.ne.s32.totalorder %s26, %s27
      %p38 = scmp.eq.s32.totalorder %s18, 0
      %p39 = por %p37, %p38
      %p40 = scmp.ne.s32.totalorder %s26, %s27
      %p41 = scmp.eq.s32.totalorder %s19, 1
      %p42 = por %p40, %p41
      %p44 = scmp.ne.s32.totalorder %s27, %s43
      %p45 = scmp.eq.s32.totalorder %s19, 0
      %p46 = por %p44, %p45
      %s48 = sadd.s32 %s47, 1
      %p51 = scmp.eq.s32.totalorder %s13, 1
      %p52 = scmp.ne.s32.totalorder %s47, %s49
      %p53 = scmp.eq.s32.totalorder %s13, 0
      %p54 = por %p52, %p53
      %p55 = scmp.ne.s32.totalorder %s47, %s49
      %p56 = scmp.eq.s32.totalorder %s18, 1
      %p57 = por %p55, %p56
      %p58 = scmp.ne.s32.totalorder %s49, %s50
      %p59 = scmp.eq.s32.totalorder %s18, 0
      %p60 = por %p58, %p59
      %p61 = scmp.ne.s32.totalorder %s49, %s50
      %p62 = scmp.eq.s32.totalorder %s19, 1
      %p63 = por %p61, %p62
      %p65 = scmp.ne.s32.totalorder %s50, %s64
      %p66 = scmp.eq.s32.totalorder %s19, 0
      %p67 = por %p65, %p66
      %s69 = sadd.s32 %s68, 1
      %p72 = scmp.eq.s32.totalorder %s13, 1
      %p73 = scmp.ne.s32.totalorder %s68, %s70
      %p74 = scmp.eq.s32.totalorder %s13, 0
      %p75 = por %p73, %p74
      %p76 = scmp.ne.s32.totalorder %s68, %s70
      %p77 = scmp.eq.s32.totalorder %s18, 1
      %p78 = por %p76, %p77
      %p79 = scmp.ne.s32.totalorder %s70, %s71
      %p80 = scmp.eq.s32.totalorder %s18, 0
      %p81 = por %p79, %p80
      %p82 = scmp.ne.s32.totalorder %s70, %s71
      %p83 = scmp.eq.s32.totalorder %s19, 1
      %p84 = por %p82, %p83
      %p86 = scmp.ne.s32.totalorder %s71, %s85
      %p87 = scmp.eq.s32.totalorder %s19, 0
      %p88 = por %p86, %p87
      %s90 = sadd.s32 %s89, 1
      %p93 = scmp.eq.s32.totalorder %s13, 1
      %p94 = scmp.ne.s32.totalorder %s89, %s91
      %p95 = scmp.eq.s32.totalorder %s13, 0
      %p96 = por %p94, %p95
      %p97 = scmp.ne.s32.totalorder %s89, %s91
      %p98 = scmp.eq.s32.totalorder %s18, 1
      %p99 = por %p97, %p98
      %p100 = scmp.ne.s32.totalorder %s91, %s92
      %p101 = scmp.eq.s32.totalorder %s18, 0
      %p102 = por %p100, %p101
      %p103 = scmp.ne.s32.totalorder %s91, %s92
      %p104 = scmp.eq.s32.totalorder %s19, 1
      %p105 = por %p103, %p104
      %p107 = scmp.ne.s32.totalorder %s92, %s106
      %p108 = scmp.eq.s32.totalorder %s19, 0
      %p109 = por %p107, %p108
      %s110 = ssub.s32 %s13, %s20
      %p111 = scmp.eq.s32.totalorder %s110, 0
      %s113 = sadd.s32 %s112, 1
      %s114 = scalar_select %p111, %s112, %s113
      %p117 = pneg %p111
      %p118 = scmp.eq.s32.totalorder %s13, 1
      %p119 = por %p117, %p118
      %p120 = scmp.ne.s32.totalorder %s112, %s115
      %p121 = scmp.eq.s32.totalorder %s13, 0
      %p122 = por %p120, %p121
      %p123 = scmp.ne.s32.totalorder %s112, %s115
      %p124 = scmp.eq.s32.totalorder %s18, 1
      %p125 = por %p123, %p124
      %p126 = scmp.ne.s32.totalorder %s115, %s116
      %p127 = scmp.eq.s32.totalorder %s18, 0
      %p128 = por %p126, %p127
      %p129 = scmp.ne.s32.totalorder %s115, %s116
      %p130 = scmp.eq.s32.totalorder %s19, 1
      %p131 = por %p129, %p130
      %p133 = scmp.ne.s32.totalorder %s116, %s132
      %p134 = scmp.eq.s32.totalorder %s19, 0
      %p135 = por %p133, %p134
      %p136 = scmp.le.s32.totalorder 1, %s13
      %p137 = scmp.lt.s32.totalorder %s13, 3
      %p138 = pnand %p136, %p137
      %p139 = pneg %p138
      // Predicated region
      $region9: #{tpu_custom_call.1} parent=5 // pred_check
        _
      $region10: #{tpu_custom_call.1} parent=5 // pred_check_branch
        %141 = sbr.rel (%p138) target = $region12
      $region11: #{tpu_custom_call.1} parent=5 // pred_region
        %s142 = ssub.s32 %s13, 1
        // Predicated region
        $region13: #{tpu_custom_call.1} parent=11 // pred_check
          %p143 = pneg %p60
        $region14: #{tpu_custom_call.1} parent=11 // pred_check_branch
          %145 = sbr.rel (%p143) target = $region16
        $region15: #{tpu_custom_call.1} parent=11 // pred_region
          _
        $region16: #{tpu_custom_call.1} parent=11 // pred_fallthru
          _
        // Predicated region
        $region17: #{tpu_custom_call.1} parent=11 // pred_check
          %p146 = pneg %p81
        $region18: #{tpu_custom_call.1} parent=11 // pred_check_branch
          %148 = sbr.rel (%p146) target = $region20
        $region19: #{tpu_custom_call.1} parent=11 // pred_region
          _
        $region20: #{tpu_custom_call.1} parent=11 // pred_fallthru
          _
        // Predicated region
        $region21: #{tpu_custom_call.1} parent=11 // pred_check
          %p149 = pneg %p102
        $region22: #{tpu_custom_call.1} parent=11 // pred_check_branch
          %151 = sbr.rel (%p149) target = $region24
        $region23: #{tpu_custom_call.1} parent=11 // pred_region
          _
        $region24: #{tpu_custom_call.1} parent=11 // pred_fallthru
          _
      $region12: #{tpu_custom_call.1} parent=5 // pred_fallthru
        _
      %p152 = scmp.lt.s32.totalorder %s13, 2
      // Predicated region
      $region25: #{tpu_custom_call.1} parent=5 // pred_check
        %p153 = pneg %p152
      $region26: #{tpu_custom_call.1} parent=5 // pred_check_branch
        %155 = sbr.rel (%p153) target = $region28
      $region27: #{tpu_custom_call.1} parent=5 // pred_region
        // Predicated region
        $region29: #{tpu_custom_call.1} parent=27 // pred_check
          %p156 = pneg %p33
        $region30: #{tpu_custom_call.1} parent=27 // pred_check_branch
          %158 = sbr.rel (%p156) target = $region32
        $region31: #{tpu_custom_call.1} parent=27 // pred_region
          %p159 = scmp.lt.s32.totalorder %s13, 1
          %s160 = scalar_select %p159, %s13, 1
          %s161 = smul.addr %s160, 2
          %s162 = smul.addr %s161, 8
          %s163 = scalar_lea.vmem %s0, %s162
        $region32: #{tpu_custom_call.1} parent=27 // pred_fallthru
          _
      $region28: #{tpu_custom_call.1} parent=5 // pred_fallthru
        _
      %p164 = scmp.le.s32.totalorder 1, %s13
      %p165 = scmp.lt.s32.totalorder %s13, 3
      %p166 = pnand %p164, %p165
      %p167 = pneg %p166
      // Predicated region
      $region33: #{tpu_custom_call.1} parent=5 // pred_check
        _
      $region34: #{tpu_custom_call.1} parent=5 // pred_check_branch
        %169 = sbr.rel (%p166) target = $region36
      $region35: #{tpu_custom_call.1} parent=5 // pred_region
        %s170 = ssub.s32 %s13, 1
        %p171 = scmp.lt.s32.totalorder %s18, 1
        %s172 = scalar_select %p171, %s18, 1
        %s173 = smul.addr %s172, 2
        %s174 = smul.addr %s173, 8
        %s175 = scalar_lea.vmem %s0, %s174
        %p176 = pneg %p39
        %p177 = pneg %p36
        %p178 = pneg %p60
        %p179 = pneg %p57
        %p180 = pneg %p81
        %p181 = pneg %p78
        %p182 = pneg %p102
        %p183 = pneg %p99
        %p184 = pneg %p128
        %p185 = pneg %p125
        %s186 = sand.u32 %s115, 1
        %s187 = scalar_lea.sflag [#allocation3], %s186
        %s188 = sand.u32 %s115, 1
        %s189 = smul.addr %s188, 16
        %s190 = scalar_lea.vmem [#allocation2], %s189
        %p191 = scmp.lt.s32.totalorder %s18, 1
        %s192 = scalar_select %p191, %s18, 1
        %s193 = smul.addr %s192, 2
        %s194 = smul.addr %s193, 8
        %s195 = scalar_lea.vmem %s0, %s194
        %v197 = vld [vmem:[%s1] sm:$0xf]
        %v198 = vld [vmem:[%s1 + $0x4] sm:$0xf]
        %v199 = vld [vmem:[%s1 + $0x8] sm:$0xf]
        %v200 = vld [vmem:[%s1 + $0xc] sm:$0xf]
        %v201 = vld [vmem:[%s1 + $0x10] sm:$0xf]
        %v202 = vld [vmem:[%s1 + $0x14] sm:$0xf]
        %v203 = vld [vmem:[%s1 + $0x18] sm:$0xf]
        %v204 = vld [vmem:[%s1 + $0x1c] sm:$0xf]
        %v205 = vld [vmem:[%s1 + $0x20] sm:$0xf]
        %v206 = vld [vmem:[%s1 + $0x24] sm:$0xf]
        %v207 = vld [vmem:[%s1 + $0x28] sm:$0xf]
        %v208 = vld [vmem:[%s1 + $0x2c] sm:$0xf]
        %v209 = vld [vmem:[%s1 + $0x30] sm:$0xf]
        %v210 = vld [vmem:[%s1 + $0x34] sm:$0xf]
        %v211 = vld [vmem:[%s1 + $0x38] sm:$0xf]
        %v212 = vld [vmem:[%s1 + $0x3c] sm:$0xf]
        %v213 = vld [vmem:[%s1 + $0x40] sm:$0xf]
        %v214 = vld [vmem:[%s1 + $0x44] sm:$0xf]
        %v215 = vld [vmem:[%s1 + $0x48] sm:$0xf]
        %v216 = vld [vmem:[%s1 + $0x4c] sm:$0xf]
        %v217 = vld [vmem:[%s1 + $0x50] sm:$0xf]
        %v218 = vld [vmem:[%s1 + $0x54] sm:$0xf]
        %v219 = vld [vmem:[%s1 + $0x58] sm:$0xf]
        %v220 = vld [vmem:[%s1 + $0x5c] sm:$0xf]
        %v221 = vld [vmem:[%s1 + $0x60] sm:$0xf]
        %v222 = vld [vmem:[%s1 + $0x64] sm:$0xf]
        %v223 = vld [vmem:[%s1 + $0x68] sm:$0xf]
        %v224 = vld [vmem:[%s1 + $0x6c] sm:$0xf]
        %v225 = vld [vmem:[%s1 + $0x70] sm:$0xf]
        %v226 = vld [vmem:[%s1 + $0x74] sm:$0xf]
        %v227 = vld [vmem:[%s1 + $0x78] sm:$0xf]
        %v228 = vld [vmem:[%s1 + $0x7c] sm:$0xf]
        %v229 = vld [vmem:[%s2] sm:$0xff]
        %v230 = vld [vmem:[%s2 + $0x8] sm:$0xff]
        %v231 = vld [vmem:[%s2 + $0x10] sm:$0xff]
        %v232 = vld [vmem:[%s2 + $0x18] sm:$0xff]
        %v233 = vld [vmem:[%s2 + $0x20] sm:$0xff]
        %v234 = vld [vmem:[%s2 + $0x28] sm:$0xff]
        %v235 = vld [vmem:[%s2 + $0x30] sm:$0xff]
        %v236 = vld [vmem:[%s2 + $0x38] sm:$0xff]
        %v237 = vld [vmem:[%s2 + $0x40] sm:$0xff]
        %v238 = vld [vmem:[%s3] sm:$0xff]
        %v239 = vld [vmem:[%s3 + $0x8] sm:$0xff]
        %v240 = vld [vmem:[%s3 + $0x10] sm:$0xff]
        %v241 = vld [vmem:[%s3 + $0x18] sm:$0xff]
        %v242 = vld [vmem:[%s3 + $0x20] sm:$0xff]
        %v243 = vld [vmem:[%s3 + $0x28] sm:$0xff]
        %v244 = vld [vmem:[%s3 + $0x30] sm:$0xff]
        %v245 = vld [vmem:[%s3 + $0x38] sm:$0xff]
        %v246 = vld [vmem:[%s3 + $0x40] sm:$0xff]
        %v247 = vld [vmem:[%s195] sm:$0xff]
        %v248 = vld [vmem:[%s195 + $0x8] sm:$0xff]
        %250 = vset.pattern.permute.xlu0 0
        %251 = vperm.xlu0 %250, %v238
        %v252 = vpop.permute.xlu0 %251
        %255 = vset.pattern.permute.xlu0 0
        %256 = vperm.xlu0 %255, %v239
        %v257 = vpop.permute.xlu0 %256
        %260 = vset.pattern.permute.xlu0 0
        %261 = vperm.xlu0 %260, %v240
        %v262 = vpop.permute.xlu0 %261
        %265 = vset.pattern.permute.xlu0 0
        %266 = vperm.xlu0 %265, %v241
        %v267 = vpop.permute.xlu0 %266
        %270 = vset.pattern.permute.xlu0 0
        %271 = vperm.xlu0 %270, %v242
        %v272 = vpop.permute.xlu0 %271
        %275 = vset.pattern.permute.xlu0 0
        %276 = vperm.xlu0 %275, %v243
        %v277 = vpop.permute.xlu0 %276
        %280 = vset.pattern.permute.xlu0 0
        %281 = vperm.xlu0 %280, %v244
        %v282 = vpop.permute.xlu0 %281
        %285 = vset.pattern.permute.xlu0 0
        %286 = vperm.xlu0 %285, %v245
        %v287 = vpop.permute.xlu0 %286
        %290 = vset.pattern.permute.xlu0 0
        %291 = vperm.xlu0 %290, %v246
        %v292 = vpop.permute.xlu0 %291
        %vm294 = vcmask 64512
        %v296 = vsel %vm294, %v229, 0
        %v299 = vsel %vm294, %v230, 0
        %v302 = vsel %vm294, %v231, 0
        %v305 = vsel %vm294, %v232, 0
        %v308 = vsel %vm294, %v233, 0
        %v311 = vsel %vm294, %v234, 0
        %v314 = vsel %vm294, %v235, 0
        %v317 = vsel %vm294, %v236, 0
        %v320 = vsel %vm294, %v237, 0
        %322 = vmatprep.subr.mxu0 %v248
        %323 = vmatpush1.msra.mxu0 %v247
        %324 = vmatprep.subr.mxu0 0.0
        %325 = vmatpush1.msra.mxu0 0.0
        %326 = vmatprep.subr.mxu0 0.0
        %327 = vmatpush1.msra.mxu0 0.0
        %328 = vmatprep.subr.mxu0 0.0
        %329 = vmatpush1.msra.mxu0 0.0
        %330 = vmatprep.subr.mxu0 0.0
        %331 = vmatpush1.msra.mxu0 0.0
        %332 = vmatprep.subr.mxu0 0.0
        %333 = vmatpush1.msra.mxu0 0.0
        %334 = vmatprep.subr.mxu0 0.0
        %335 = vmatpush1.msra.mxu0 0.0
        %336 = vmatprep.subr.mxu0 0.0
        %337 = vmatpush1.msra.mxu0 0.0
        %338 = vmatprep.subr.mxu0 0.0
        %339 = vmatpush1.msra.mxu0 0.0
        %340 = vmatprep.subr.mxu0 0.0
        %341 = vmatpush1.msra.mxu0 0.0
        %342 = vmatprep.subr.mxu0 0.0
        %343 = vmatpush1.msra.mxu0 0.0
        %344 = vmatprep.subr.mxu0 0.0
        %345 = vmatpush1.msra.mxu0 0.0
        %346 = vmatprep.subr.mxu0 0.0
        %347 = vmatpush1.msra.mxu0 0.0
        %348 = vmatprep.subr.mxu0 0.0
        %349 = vmatpush1.msra.mxu0 0.0
        %350 = vmatprep.subr.mxu0 0.0
        %351 = vmatpush1.msra.mxu0 0.0
        %352 = vmatprep.subr.mxu0 0.0
        %353 = vmatpush1.msra.mxu0 0.0
        %354 = vmatprep.subr.mxu0 0.0
        %355 = vmatpush1.msra.mxu0 0.0
        %356 = vmatprep.subr.mxu0 0.0
        %357 = vmatpush1.msra.mxu0 0.0
        %358 = vmatprep.subr.mxu0 0.0
        %359 = vmatpush1.msra.mxu0 0.0
        %360 = vmatprep.subr.mxu0 0.0
        %361 = vmatpush1.msra.mxu0 0.0
        %362 = vmatprep.subr.mxu0 0.0
        %363 = vmatpush1.msra.mxu0 0.0
        %364 = vmatprep.subr.mxu0 0.0
        %365 = vmatpush1.msra.mxu0 0.0
        %366 = vmatprep.subr.mxu0 0.0
        %367 = vmatpush1.msra.mxu0 0.0
        %368 = vmatprep.subr.mxu0 0.0
        %369 = vmatpush1.msra.mxu0 0.0
        %370 = vmatprep.subr.mxu0 0.0
        %371 = vmatpush1.msra.mxu0 0.0
        %372 = vmatprep.subr.mxu0 0.0
        %373 = vmatpush1.msra.mxu0 0.0
        %374 = vmatprep.subr.mxu0 0.0
        %375 = vmatpush1.msra.mxu0 0.0
        %376 = vmatprep.subr.mxu0 0.0
        %377 = vmatpush1.msra.mxu0 0.0
        %378 = vmatprep.subr.mxu0 0.0
        %379 = vmatpush1.msra.mxu0 0.0
        %380 = vmatprep.subr.mxu0 0.0
        %381 = vmatpush1.msra.mxu0 0.0
        %382 = vmatprep.subr.mxu0 0.0
        %383 = vmatpush1.msra.mxu0 0.0
        %384 = vmatprep.subr.mxu0 0.0
        %385 = vmatpush1.msra.mxu0 0.0
        %386 = vmatprep.mubr.f32.mxu0 0.0
        %387 = vmatmul.mubr.f32.gmra.mrb[0].mxu0 %v296
        %v388 = vpop.f32.mrb[0].mxu0
        %v389 = vadd.f32 %v252, %v388
        %v390 = vpop.f32.mrb[0].mxu0
        %v391 = vadd.f32 %v252, %v390
        %392 = vmatprep.mubr.f32.mxu0 0.0
        %393 = vmatmul.mubr.f32.gmra.mrb[0].mxu0 %v299
        %v394 = vpop.f32.mrb[0].mxu0
        %v395 = vadd.f32 %v257, %v394
        %v396 = vpop.f32.mrb[0].mxu0
        %v397 = vadd.f32 %v257, %v396
        %398 = vmatprep.mubr.f32.mxu0 0.0
        %399 = vmatmul.mubr.f32.gmra.mrb[0].mxu0 %v302
        %v400 = vpop.f32.mrb[0].mxu0
        %v401 = vadd.f32 %v262, %v400
        %v402 = vpop.f32.mrb[0].mxu0
        %v403 = vadd.f32 %v262, %v402
        %404 = vmatprep.mubr.f32.mxu0 0.0
        %405 = vmatmul.mubr.f32.gmra.mrb[0].mxu0 %v305
        %v406 = vpop.f32.mrb[0].mxu0
        %v407 = vadd.f32 %v267, %v406
        %v408 = vpop.f32.mrb[0].mxu0
        %v409 = vadd.f32 %v267, %v408
        %410 = vmatprep.mubr.f32.mxu0 0.0
        %411 = vmatmul.mubr.f32.gmra.mrb[0].mxu0 %v308
        %v412 = vpop.f32.mrb[0].mxu0
        %v413 = vadd.f32 %v272, %v412
        %v414 = vpop.f32.mrb[0].mxu0
        %v415 = vadd.f32 %v272, %v414
        %416 = vmatprep.mubr.f32.mxu0 0.0
        %417 = vmatmul.mubr.f32.gmra.mrb[0].mxu0 %v311
        %v418 = vpop.f32.mrb[0].mxu0
        %v419 = vadd.f32 %v277, %v418
        %v420 = vpop.f32.mrb[0].mxu0
        %v421 = vadd.f32 %v277, %v420
        %422 = vmatprep.mubr.f32.mxu0 0.0
        %423 = vmatmul.mubr.f32.gmra.mrb[0].mxu0 %v314
        %v424 = vpop.f32.mrb[0].mxu0
        %v425 = vadd.f32 %v282, %v424
        %v426 = vpop.f32.mrb[0].mxu0
        %v427 = vadd.f32 %v282, %v426
        %428 = vmatprep.mubr.f32.mxu0 0.0
        %429 = vmatmul.mubr.f32.gmra.mrb[0].mxu0 %v317
        %v430 = vpop.f32.mrb[0].mxu0
        %v431 = vadd.f32 %v287, %v430
        %v432 = vpop.f32.mrb[0].mxu0
        %v433 = vadd.f32 %v287, %v432
        %434 = vmatprep.mubr.f32.mxu0 0.0
        %435 = vmatmul.mubr.f32.gmra.mrb[0].mxu0 %v320
        %v436 = vpop.f32.mrb[0].mxu0
        %v437 = vadd.f32 %v292, %v436
        %v438 = vpop.f32.mrb[0].mxu0
        %v439 = vadd.f32 %v292, %v438
        %440 = vdwg.mxu0
        %v441 = vmul.f32 %v389, %v389
        %v442 = vmul.f32 %v391, %v391
        %v443 = vmul.f32 %v395, %v395
        %v444 = vmul.f32 %v397, %v397
        %v445 = vmul.f32 %v401, %v401
        %v446 = vmul.f32 %v403, %v403
        %v447 = vmul.f32 %v407, %v407
        %v448 = vmul.f32 %v409, %v409
        %v449 = vmul.f32 %v413, %v413
        %v450 = vmul.f32 %v415, %v415
        %v451 = vmul.f32 %v419, %v419
        %v452 = vmul.f32 %v421, %v421
        %v453 = vmul.f32 %v425, %v425
        %v454 = vmul.f32 %v427, %v427
        %v455 = vmul.f32 %v431, %v431
        %v456 = vmul.f32 %v433, %v433
        %v457 = vadd.f32 %v441, %v443
        %v458 = vadd.f32 %v457, %v445
        %v459 = vadd.f32 %v458, %v447
        %v460 = vadd.f32 %v459, %v449
        %v461 = vadd.f32 %v460, %v451
        %v462 = vadd.f32 %v461, %v453
        %v463 = vadd.f32 %v462, %v455
        %v464 = vrot.slane %v463, 4
        %v465 = vadd.f32 %v463, %v464
        %v466 = vrot.slane %v465, 2
        %v467 = vadd.f32 %v465, %v466
        %v468 = vrot.slane %v467, 1
        %v469 = vadd.f32 %v467, %v468
        %v470 = vadd.f32 %v442, %v444
        %v471 = vadd.f32 %v470, %v446
        %v472 = vadd.f32 %v471, %v448
        %v473 = vadd.f32 %v472, %v450
        %v474 = vadd.f32 %v473, %v452
        %v475 = vadd.f32 %v474, %v454
        %v476 = vadd.f32 %v475, %v456
        %v477 = vrot.slane %v476, 4
        %v478 = vadd.f32 %v476, %v477
        %v479 = vrot.slane %v478, 2
        %v480 = vadd.f32 %v478, %v479
        %v481 = vrot.slane %v480, 1
        %v482 = vadd.f32 %v480, %v481
        %v483 = vmax.f32 %v469, 1e-24
        %v484 = vmax.f32 %v482, 1e-24
        %v485 = vrsqrt.pop %v483
        %v486 = vrsqrt.pop %v484
        %v487 = vmul.f32 %v485, 0.14142136
        %v488 = vmul.f32 %v486, 0.14142136
        %v489 = vmul.f32 %v389, %v487
        %v490 = vmul.f32 %v391, %v488
        %v491 = vmul.f32 %v395, %v487
        %v492 = vmul.f32 %v397, %v488
        %v493 = vmul.f32 %v401, %v487
        %v494 = vmul.f32 %v403, %v488
        %v495 = vmul.f32 %v407, %v487
        %v496 = vmul.f32 %v409, %v488
        %v497 = vmul.f32 %v413, %v487
        %v498 = vmul.f32 %v415, %v488
        %v499 = vmul.f32 %v419, %v487
        %v500 = vmul.f32 %v421, %v488
        %v501 = vmul.f32 %v425, %v487
        %v502 = vmul.f32 %v427, %v488
        %v503 = vmul.f32 %v431, %v487
        %v504 = vmul.f32 %v433, %v488
        %v505 = vpack.c.bf16 %v491, %v489
        %v506 = vpack.c.bf16 %v492, %v490
        %v507 = vpack.c.bf16 %v495, %v493
        %v508 = vpack.c.bf16 %v496, %v494
        %v509 = vpack.c.bf16 %v499, %v497
        %v510 = vpack.c.bf16 %v500, %v498
        %v511 = vpack.c.bf16 %v503, %v501
        %v512 = vpack.c.bf16 %v504, %v502
        %v545 = vunpack.c.l.b16 %v197
        %v546 = vunpack.c.l.b16 %v198
        %v547 = vunpack.c.l.b16 %v199
        %v548 = vunpack.c.l.b16 %v200
        %v549 = vunpack.c.l.b16 %v201
        %v550 = vunpack.c.l.b16 %v202
        %v551 = vunpack.c.l.b16 %v203
        %v552 = vunpack.c.l.b16 %v204
        %v553 = vunpack.c.l.b16 %v205
        %v554 = vunpack.c.l.b16 %v206
        %v555 = vunpack.c.l.b16 %v207
        %v556 = vunpack.c.l.b16 %v208
        %v557 = vunpack.c.l.b16 %v209
        %v558 = vunpack.c.l.b16 %v210
        %v559 = vunpack.c.l.b16 %v211
        %v560 = vunpack.c.l.b16 %v212
        %v561 = vunpack.c.l.b16 %v213
        %v562 = vunpack.c.l.b16 %v214
        %v563 = vunpack.c.l.b16 %v215
        %v564 = vunpack.c.l.b16 %v216
        %v565 = vunpack.c.l.b16 %v217
        %v566 = vunpack.c.l.b16 %v218
        %v567 = vunpack.c.l.b16 %v219
        %v568 = vunpack.c.l.b16 %v220
        %v569 = vunpack.c.l.b16 %v221
        %v570 = vunpack.c.l.b16 %v222
        %v571 = vunpack.c.l.b16 %v223
        %v572 = vunpack.c.l.b16 %v224
        %v573 = vunpack.c.l.b16 %v225
        %v574 = vunpack.c.l.b16 %v226
        %v575 = vunpack.c.l.b16 %v227
        %v576 = vunpack.c.l.b16 %v228
        %v577 = vpack.c.b16 %v546, %v545
        %v578 = vpack.c.b16 %v548, %v547
        %v579 = vpack.c.b16 %v550, %v549
        %v580 = vpack.c.b16 %v552, %v551
        %v581 = vpack.c.b16 %v554, %v553
        %v582 = vpack.c.b16 %v556, %v555
        %v583 = vpack.c.b16 %v558, %v557
        %v584 = vpack.c.b16 %v560, %v559
        %v585 = vpack.c.b16 %v562, %v561
        %v586 = vpack.c.b16 %v564, %v563
        %v587 = vpack.c.b16 %v566, %v565
        %v588 = vpack.c.b16 %v568, %v567
        %v589 = vpack.c.b16 %v570, %v569
        %v590 = vpack.c.b16 %v572, %v571
        %v591 = vpack.c.b16 %v574, %v573
        %v592 = vpack.c.b16 %v576, %v575
        %vm593 = vcmask 523264
        %v595 = vsel %vm593, %v577, 0
        %v598 = vsel %vm593, %v578, 0
        %v601 = vsel %vm593, %v579, 0
        %v604 = vsel %vm593, %v580, 0
        %v607 = vsel %vm593, %v581, 0
        %v610 = vsel %vm593, %v582, 0
        %v613 = vsel %vm593, %v583, 0
        %v616 = vsel %vm593, %v584, 0
        %v619 = vsel %vm593, %v585, 0
        %v622 = vsel %vm593, %v586, 0
        %v625 = vsel %vm593, %v587, 0
        %v628 = vsel %vm593, %v588, 0
        %v631 = vsel %vm593, %v589, 0
        %v634 = vsel %vm593, %v590, 0
        %v637 = vsel %vm593, %v591, 0
        %v640 = vsel %vm593, %v592, 0
        %642 = vmatprep.subr.bf16.mxu0 %v506
        %643 = vmatpush1.bf16.msra.mxu0 %v505
        %644 = vmatprep.subr.bf16.mxu0 %v508
        %645 = vmatpush1.bf16.msra.mxu0 %v507
        %646 = vmatprep.subr.bf16.mxu0 %v510
        %647 = vmatpush1.bf16.msra.mxu0 %v509
        %648 = vmatprep.subr.bf16.mxu0 %v512
        %649 = vmatpush1.bf16.msra.mxu0 %v511
        %650 = vmatprep.subr.bf16.mxu0 0
        %651 = vmatpush1.bf16.msra.mxu0 0
        %652 = vmatprep.subr.bf16.mxu0 0
        %653 = vmatpush1.bf16.msra.mxu0 0
        %654 = vmatprep.subr.bf16.mxu0 0
        %655 = vmatpush1.bf16.msra.mxu0 0
        %656 = vmatprep.subr.bf16.mxu0 0
        %657 = vmatpush1.bf16.msra.mxu0 0
        %658 = vmatprep.subr.bf16.mxu0 0
        %659 = vmatpush1.bf16.msra.mxu0 0
        %660 = vmatprep.subr.bf16.mxu0 0
        %661 = vmatpush1.bf16.msra.mxu0 0
        %662 = vmatprep.subr.bf16.mxu0 0
        %663 = vmatpush1.bf16.msra.mxu0 0
        %664 = vmatprep.subr.bf16.mxu0 0
        %665 = vmatpush1.bf16.msra.mxu0 0
        %666 = vmatprep.subr.bf16.mxu0 0
        %667 = vmatpush1.bf16.msra.mxu0 0
        %668 = vmatprep.subr.bf16.mxu0 0
        %669 = vmatpush1.bf16.msra.mxu0 0
        %670 = vmatprep.subr.bf16.mxu0 0
        %671 = vmatpush1.bf16.msra.mxu0 0
        %672 = vmatprep.subr.bf16.mxu0 0
        %673 = vmatpush1.bf16.msra.mxu0 0
        %674 = vmatprep.mubr.bf16.mxu0 0
        %675 = vmatmul.mubr.bf16.gmra.mrb[0].mxu0 %v595
        %v676 = vpop.f32.mrb[0].mxu0
        %v677 = vadd.f32 0.0, %v676
        %v678 = vpop.f32.mrb[0].mxu0
        %v679 = vadd.f32 0.0, %v678
        %v680 = vpop.f32.mrb[0].mxu0
        %v681 = vadd.f32 0.0, %v680
        %v682 = vpop.f32.mrb[0].mxu0
        %v683 = vadd.f32 0.0, %v682
        %684 = vmatprep.mubr.bf16.mxu0 0
        %685 = vmatmul.mubr.bf16.gmra.mrb[0].mxu0 %v598
        %v686 = vpop.f32.mrb[0].mxu0
        %v687 = vadd.f32 0.0, %v686
        %v688 = vpop.f32.mrb[0].mxu0
        %v689 = vadd.f32 0.0, %v688
        %v690 = vpop.f32.mrb[0].mxu0
        %v691 = vadd.f32 0.0, %v690
        %v692 = vpop.f32.mrb[0].mxu0
        %v693 = vadd.f32 0.0, %v692
        %694 = vmatprep.mubr.bf16.mxu0 0
        %695 = vmatmul.mubr.bf16.gmra.mrb[0].mxu0 %v601
        %v696 = vpop.f32.mrb[0].mxu0
        %v697 = vadd.f32 0.0, %v696
        %v698 = vpop.f32.mrb[0].mxu0
        %v699 = vadd.f32 0.0, %v698
        %v700 = vpop.f32.mrb[0].mxu0
        %v701 = vadd.f32 0.0, %v700
        %v702 = vpop.f32.mrb[0].mxu0
        %v703 = vadd.f32 0.0, %v702
        %704 = vmatprep.mubr.bf16.mxu0 0
        %705 = vmatmul.mubr.bf16.gmra.mrb[0].mxu0 %v604
        %v706 = vpop.f32.mrb[0].mxu0
        %v707 = vadd.f32 0.0, %v706
        %v708 = vpop.f32.mrb[0].mxu0
        %v709 = vadd.f32 0.0, %v708
        %v710 = vpop.f32.mrb[0].mxu0
        %v711 = vadd.f32 0.0, %v710
        %v712 = vpop.f32.mrb[0].mxu0
        %v713 = vadd.f32 0.0, %v712
        %714 = vmatprep.mubr.bf16.mxu0 0
        %715 = vmatmul.mubr.bf16.gmra.mrb[0].mxu0 %v607
        %v716 = vpop.f32.mrb[0].mxu0
        %v717 = vadd.f32 0.0, %v716
        %v718 = vpop.f32.mrb[0].mxu0
        %v719 = vadd.f32 0.0, %v718
        %v720 = vpop.f32.mrb[0].mxu0
        %v721 = vadd.f32 0.0, %v720
        %v722 = vpop.f32.mrb[0].mxu0
        %v723 = vadd.f32 0.0, %v722
        %724 = vmatprep.mubr.bf16.mxu0 0
        %725 = vmatmul.mubr.bf16.gmra.mrb[0].mxu0 %v610
        %v726 = vpop.f32.mrb[0].mxu0
        %v727 = vadd.f32 0.0, %v726
        %v728 = vpop.f32.mrb[0].mxu0
        %v729 = vadd.f32 0.0, %v728
        %v730 = vpop.f32.mrb[0].mxu0
        %v731 = vadd.f32 0.0, %v730
        %v732 = vpop.f32.mrb[0].mxu0
        %v733 = vadd.f32 0.0, %v732
        %734 = vmatprep.mubr.bf16.mxu0 0
        %735 = vmatmul.mubr.bf16.gmra.mrb[0].mxu0 %v613
        %v736 = vpop.f32.mrb[0].mxu0
        %v737 = vadd.f32 0.0, %v736
        %v738 = vpop.f32.mrb[0].mxu0
        %v739 = vadd.f32 0.0, %v738
        %v740 = vpop.f32.mrb[0].mxu0
        %v741 = vadd.f32 0.0, %v740
        %v742 = vpop.f32.mrb[0].mxu0
        %v743 = vadd.f32 0.0, %v742
        %744 = vmatprep.mubr.bf16.mxu0 0
        %745 = vmatmul.mubr.bf16.gmra.mrb[0].mxu0 %v616
        %v746 = vpop.f32.mrb[0].mxu0
        %v747 = vadd.f32 0.0, %v746
        %v748 = vpop.f32.mrb[0].mxu0
        %v749 = vadd.f32 0.0, %v748
        %v750 = vpop.f32.mrb[0].mxu0
        %v751 = vadd.f32 0.0, %v750
        %v752 = vpop.f32.mrb[0].mxu0
        %v753 = vadd.f32 0.0, %v752
        %754 = vmatprep.mubr.bf16.mxu0 0
        %755 = vmatmul.mubr.bf16.gmra.mrb[0].mxu0 %v619
        %v756 = vpop.f32.mrb[0].mxu0
        %v757 = vadd.f32 0.0, %v756
        %v758 = vpop.f32.mrb[0].mxu0
        %v759 = vadd.f32 0.0, %v758
        %v760 = vpop.f32.mrb[0].mxu0
        %v761 = vadd.f32 0.0, %v760
        %v762 = vpop.f32.mrb[0].mxu0
        %v763 = vadd.f32 0.0, %v762
        %764 = vmatprep.mubr.bf16.mxu0 0
        %765 = vmatmul.mubr.bf16.gmra.mrb[0].mxu0 %v622
        %v766 = vpop.f32.mrb[0].mxu0
        %v767 = vadd.f32 0.0, %v766
        %v768 = vpop.f32.mrb[0].mxu0
        %v769 = vadd.f32 0.0, %v768
        %v770 = vpop.f32.mrb[0].mxu0
        %v771 = vadd.f32 0.0, %v770
        %v772 = vpop.f32.mrb[0].mxu0
        %v773 = vadd.f32 0.0, %v772
        %774 = vmatprep.mubr.bf16.mxu0 0
        %775 = vmatmul.mubr.bf16.gmra.mrb[0].mxu0 %v625
        %v776 = vpop.f32.mrb[0].mxu0
        %v777 = vadd.f32 0.0, %v776
        %v778 = vpop.f32.mrb[0].mxu0
        %v779 = vadd.f32 0.0, %v778
        %v780 = vpop.f32.mrb[0].mxu0
        %v781 = vadd.f32 0.0, %v780
        %v782 = vpop.f32.mrb[0].mxu0
        %v783 = vadd.f32 0.0, %v782
        %784 = vmatprep.mubr.bf16.mxu0 0
        %785 = vmatmul.mubr.bf16.gmra.mrb[0].mxu0 %v628
        %v786 = vpop.f32.mrb[0].mxu0
        %v787 = vadd.f32 0.0, %v786
        %v788 = vpop.f32.mrb[0].mxu0
        %v789 = vadd.f32 0.0, %v788
        %v790 = vpop.f32.mrb[0].mxu0
        %v791 = vadd.f32 0.0, %v790
        %v792 = vpop.f32.mrb[0].mxu0
        %v793 = vadd.f32 0.0, %v792
        %794 = vmatprep.mubr.bf16.mxu0 0
        %795 = vmatmul.mubr.bf16.gmra.mrb[0].mxu0 %v631
        %v796 = vpop.f32.mrb[0].mxu0
        %v797 = vadd.f32 0.0, %v796
        %v798 = vpop.f32.mrb[0].mxu0
        %v799 = vadd.f32 0.0, %v798
        %v800 = vpop.f32.mrb[0].mxu0
        %v801 = vadd.f32 0.0, %v800
        %v802 = vpop.f32.mrb[0].mxu0
        %v803 = vadd.f32 0.0, %v802
        %804 = vmatprep.mubr.bf16.mxu0 0
        %805 = vmatmul.mubr.bf16.gmra.mrb[0].mxu0 %v634
        %v806 = vpop.f32.mrb[0].mxu0
        %v807 = vadd.f32 0.0, %v806
        %v808 = vpop.f32.mrb[0].mxu0
        %v809 = vadd.f32 0.0, %v808
        %v810 = vpop.f32.mrb[0].mxu0
        %v811 = vadd.f32 0.0, %v810
        %v812 = vpop.f32.mrb[0].mxu0
        %v813 = vadd.f32 0.0, %v812
        %814 = vmatprep.mubr.bf16.mxu0 0
        %815 = vmatmul.mubr.bf16.gmra.mrb[0].mxu0 %v637
        %v816 = vpop.f32.mrb[0].mxu0
        %v817 = vadd.f32 0.0, %v816
        %v818 = vpop.f32.mrb[0].mxu0
        %v819 = vadd.f32 0.0, %v818
        %v820 = vpop.f32.mrb[0].mxu0
        %v821 = vadd.f32 0.0, %v820
        %v822 = vpop.f32.mrb[0].mxu0
        %v823 = vadd.f32 0.0, %v822
        %824 = vmatprep.mubr.bf16.mxu0 0
        %825 = vmatmul.mubr.bf16.gmra.mrb[0].mxu0 %v640
        %v826 = vpop.f32.mrb[0].mxu0
        %v827 = vadd.f32 0.0, %v826
        %v828 = vpop.f32.mrb[0].mxu0
        %v829 = vadd.f32 0.0, %v828
        %v830 = vpop.f32.mrb[0].mxu0
        %v831 = vadd.f32 0.0, %v830
        %v832 = vpop.f32.mrb[0].mxu0
        %v833 = vadd.f32 0.0, %v832
        %834 = vdwg.mxu0
        %v835 = vmax.f32 %v677, %v687
        %v836 = vmax.f32 %v681, %v691
        %v837 = vmax.f32 %v835, %v697
        %v838 = vmax.f32 %v836, %v701
        %v839 = vmax.f32 %v837, %v707
        %v840 = vmax.f32 %v838, %v711
        %v841 = vmax.f32 %v839, %v717
        %v842 = vmax.f32 %v840, %v721
        %v843 = vmax.f32 %v841, %v727
        %v844 = vmax.f32 %v842, %v731
        %v845 = vmax.f32 %v843, %v737
        %v846 = vmax.f32 %v844, %v741
        %v847 = vmax.f32 %v845, %v747
        %v848 = vmax.f32 %v846, %v751
        %v849 = vmax.f32 %v847, %v757
        %v850 = vmax.f32 %v848, %v761
        %v851 = vmax.f32 %v849, %v767
        %v852 = vmax.f32 %v850, %v771
        %v853 = vmax.f32 %v851, %v777
        %v854 = vmax.f32 %v852, %v781
        %v855 = vmax.f32 %v853, %v787
        %v856 = vmax.f32 %v854, %v791
        %v857 = vmax.f32 %v855, %v797
        %v858 = vmax.f32 %v856, %v801
        %v859 = vmax.f32 %v857, %v807
        %v860 = vmax.f32 %v858, %v811
        %v861 = vmax.f32 %v859, %v817
        %v862 = vmax.f32 %v860, %v821
        %v863 = vmax.f32 %v861, %v827
        %v864 = vmax.f32 %v862, %v831
        %v865 = vmax.f32 %v863, %v864
        %v866 = vrot.slane %v865, 4
        %v867 = vmax.f32 %v865, %v866
        %v868 = vrot.slane %v867, 2
        %v869 = vmax.f32 %v867, %v868
        %v870 = vrot.slane %v869, 1
        %v871 = vmax.f32 %v869, %v870
        %v872 = vmax.f32 %v679, %v689
        %v873 = vmax.f32 %v683, %v693
        %v874 = vmax.f32 %v872, %v699
        %v875 = vmax.f32 %v873, %v703
        %v876 = vmax.f32 %v874, %v709
        %v877 = vmax.f32 %v875, %v713
        %v878 = vmax.f32 %v876, %v719
        %v879 = vmax.f32 %v877, %v723
        %v880 = vmax.f32 %v878, %v729
        %v881 = vmax.f32 %v879, %v733
        %v882 = vmax.f32 %v880, %v739
        %v883 = vmax.f32 %v881, %v743
        %v884 = vmax.f32 %v882, %v749
        %v885 = vmax.f32 %v883, %v753
        %v886 = vmax.f32 %v884, %v759
        %v887 = vmax.f32 %v885, %v763
        %v888 = vmax.f32 %v886, %v769
        %v889 = vmax.f32 %v887, %v773
        %v890 = vmax.f32 %v888, %v779
        %v891 = vmax.f32 %v889, %v783
        %v892 = vmax.f32 %v890, %v789
        %v893 = vmax.f32 %v891, %v793
        %v894 = vmax.f32 %v892, %v799
        %v895 = vmax.f32 %v893, %v803
        %v896 = vmax.f32 %v894, %v809
        %v897 = vmax.f32 %v895, %v813
        %v898 = vmax.f32 %v896, %v819
        %v899 = vmax.f32 %v897, %v823
        %v900 = vmax.f32 %v898, %v829
        %v901 = vmax.f32 %v899, %v833
        %v902 = vmax.f32 %v900, %v901
        %v903 = vrot.slane %v902, 4
        %v904 = vmax.f32 %v902, %v903
        %v905 = vrot.slane %v904, 2
        %v906 = vmax.f32 %v904, %v905
        %v907 = vrot.slane %v906, 1
        %v908 = vmax.f32 %v906, %v907
        %v909 = vsub.f32 %v677, %v871
        %v910 = vsub.f32 %v679, %v908
        %v911 = vsub.f32 %v681, %v871
        %v912 = vsub.f32 %v683, %v908
        %v913 = vsub.f32 %v687, %v871
        %v914 = vsub.f32 %v689, %v908
        %v915 = vsub.f32 %v691, %v871
        %v916 = vsub.f32 %v693, %v908
        %v917 = vsub.f32 %v697, %v871
        %v918 = vsub.f32 %v699, %v908
        %v919 = vsub.f32 %v701, %v871
        %v920 = vsub.f32 %v703, %v908
        %v921 = vsub.f32 %v707, %v871
        %v922 = vsub.f32 %v709, %v908
        %v923 = vsub.f32 %v711, %v871
        %v924 = vsub.f32 %v713, %v908
        %v925 = vsub.f32 %v717, %v871
        %v926 = vsub.f32 %v719, %v908
        %v927 = vsub.f32 %v721, %v871
        %v928 = vsub.f32 %v723, %v908
        %v929 = vsub.f32 %v727, %v871
        %v930 = vsub.f32 %v729, %v908
        %v931 = vsub.f32 %v731, %v871
        %v932 = vsub.f32 %v733, %v908
        %v933 = vsub.f32 %v737, %v871
        %v934 = vsub.f32 %v739, %v908
        %v935 = vsub.f32 %v741, %v871
        %v936 = vsub.f32 %v743, %v908
        %v937 = vsub.f32 %v747, %v871
        %v938 = vsub.f32 %v749, %v908
        %v939 = vsub.f32 %v751, %v871
        %v940 = vsub.f32 %v753, %v908
        %v941 = vsub.f32 %v757, %v871
        %v942 = vsub.f32 %v759, %v908
        %v943 = vsub.f32 %v761, %v871
        %v944 = vsub.f32 %v763, %v908
        %v945 = vsub.f32 %v767, %v871
        %v946 = vsub.f32 %v769, %v908
        %v947 = vsub.f32 %v771, %v871
        %v948 = vsub.f32 %v773, %v908
        %v949 = vsub.f32 %v777, %v871
        %v950 = vsub.f32 %v779, %v908
        %v951 = vsub.f32 %v781, %v871
        %v952 = vsub.f32 %v783, %v908
        %v953 = vsub.f32 %v787, %v871
        %v954 = vsub.f32 %v789, %v908
        %v955 = vsub.f32 %v791, %v871
        %v956 = vsub.f32 %v793, %v908
        %v957 = vsub.f32 %v797, %v871
        %v958 = vsub.f32 %v799, %v908
        %v959 = vsub.f32 %v801, %v871
        %v960 = vsub.f32 %v803, %v908
        %v961 = vsub.f32 %v807, %v871
        %v962 = vsub.f32 %v809, %v908
        %v963 = vsub.f32 %v811, %v871
        %v964 = vsub.f32 %v813, %v908
        %v965 = vsub.f32 %v817, %v871
        %v966 = vsub.f32 %v819, %v908
        %v967 = vsub.f32 %v821, %v871
        %v968 = vsub.f32 %v823, %v908
        %v969 = vsub.f32 %v827, %v871
        %v970 = vsub.f32 %v829, %v908
        %v971 = vsub.f32 %v831, %v871
        %v972 = vsub.f32 %v833, %v908
        %v973 = vmul.f32 %v909, 1.442695
        %v974 = vpow.pop %v973
        %v975 = vmul.f32 %v910, 1.442695
        %v976 = vpow.pop %v975
        %v977 = vmul.f32 %v911, 1.442695
        %v978 = vpow.pop %v977
        %v979 = vmul.f32 %v912, 1.442695
        %v980 = vpow.pop %v979
        %v981 = vmul.f32 %v913, 1.442695
        %v982 = vpow.pop %v981
        %v983 = vmul.f32 %v914, 1.442695
        %v984 = vpow.pop %v983
        %v985 = vmul.f32 %v915, 1.442695
        %v986 = vpow.pop %v985
        %v987 = vmul.f32 %v916, 1.442695
        %v988 = vpow.pop %v987
        %v989 = vmul.f32 %v917, 1.442695
        %v990 = vpow.pop %v989
        %v991 = vmul.f32 %v918, 1.442695
        %v992 = vpow.pop %v991
        %v993 = vmul.f32 %v919, 1.442695
        %v994 = vpow.pop %v993
        %v995 = vmul.f32 %v920, 1.442695
        %v996 = vpow.pop %v995
        %v997 = vmul.f32 %v921, 1.442695
        %v998 = vpow.pop %v997
        %v999 = vmul.f32 %v922, 1.442695
        %v1000 = vpow.pop %v999
        %v1001 = vmul.f32 %v923, 1.442695
        %v1002 = vpow.pop %v1001
        %v1003 = vmul.f32 %v924, 1.442695
        %v1004 = vpow.pop %v1003
        %v1005 = vmul.f32 %v925, 1.442695
        %v1006 = vpow.pop %v1005
        %v1007 = vmul.f32 %v926, 1.442695
        %v1008 = vpow.pop %v1007
        %v1009 = vmul.f32 %v927, 1.442695
        %v1010 = vpow.pop %v1009
        %v1011 = vmul.f32 %v928, 1.442695
        %v1012 = vpow.pop %v1011
        %v1013 = vmul.f32 %v929, 1.442695
        %v1014 = vpow.pop %v1013
        %v1015 = vmul.f32 %v930, 1.442695
        %v1016 = vpow.pop %v1015
        %v1017 = vmul.f32 %v931, 1.442695
        %v1018 = vpow.pop %v1017
        %v1019 = vmul.f32 %v932, 1.442695
        %v1020 = vpow.pop %v1019
        %v1021 = vmul.f32 %v933, 1.442695
        %v1022 = vpow.pop %v1021
        %v1023 = vmul.f32 %v934, 1.442695
        %v1024 = vpow.pop %v1023
        %v1025 = vmul.f32 %v935, 1.442695
        %v1026 = vpow.pop %v1025
        %v1027 = vmul.f32 %v936, 1.442695
        %v1028 = vpow.pop %v1027
        %v1029 = vmul.f32 %v937, 1.442695
        %v1030 = vpow.pop %v1029
        %v1031 = vmul.f32 %v938, 1.442695
        %v1032 = vpow.pop %v1031
        %v1033 = vmul.f32 %v939, 1.442695
        %v1034 = vpow.pop %v1033
        %v1035 = vmul.f32 %v940, 1.442695
        %v1036 = vpow.pop %v1035
        %v1037 = vmul.f32 %v941, 1.442695
        %v1038 = vpow.pop %v1037
        %v1039 = vmul.f32 %v942, 1.442695
        %v1040 = vpow.pop %v1039
        %v1041 = vmul.f32 %v943, 1.442695
        %v1042 = vpow.pop %v1041
        %v1043 = vmul.f32 %v944, 1.442695
        %v1044 = vpow.pop %v1043
        %v1045 = vmul.f32 %v945, 1.442695
        %v1046 = vpow.pop %v1045
        %v1047 = vmul.f32 %v946, 1.442695
        %v1048 = vpow.pop %v1047
        %v1049 = vmul.f32 %v947, 1.442695
        %v1050 = vpow.pop %v1049
        %v1051 = vmul.f32 %v948, 1.442695
        %v1052 = vpow.pop %v1051
        %v1053 = vmul.f32 %v949, 1.442695
        %v1054 = vpow.pop %v1053
        %v1055 = vmul.f32 %v950, 1.442695
        %v1056 = vpow.pop %v1055
        %v1057 = vmul.f32 %v951, 1.442695
        %v1058 = vpow.pop %v1057
        %v1059 = vmul.f32 %v952, 1.442695
        %v1060 = vpow.pop %v1059
        %v1061 = vmul.f32 %v953, 1.442695
        %v1062 = vpow.pop %v1061
        %v1063 = vmul.f32 %v954, 1.442695
        %v1064 = vpow.pop %v1063
        %v1065 = vmul.f32 %v955, 1.442695
        %v1066 = vpow.pop %v1065
        %v1067 = vmul.f32 %v956, 1.442695
        %v1068 = vpow.pop %v1067
        %v1069 = vmul.f32 %v957, 1.442695
        %v1070 = vpow.pop %v1069
        %v1071 = vmul.f32 %v958, 1.442695
        %v1072 = vpow.pop %v1071
        %v1073 = vmul.f32 %v959, 1.442695
        %v1074 = vpow.pop %v1073
        %v1075 = vmul.f32 %v960, 1.442695
        %v1076 = vpow.pop %v1075
        %v1077 = vmul.f32 %v961, 1.442695
        %v1078 = vpow.pop %v1077
        %v1079 = vmul.f32 %v962, 1.442695
        %v1080 = vpow.pop %v1079
        %v1081 = vmul.f32 %v963, 1.442695
        %v1082 = vpow.pop %v1081
        %v1083 = vmul.f32 %v964, 1.442695
        %v1084 = vpow.pop %v1083
        %v1085 = vmul.f32 %v965, 1.442695
        %v1086 = vpow.pop %v1085
        %v1087 = vmul.f32 %v966, 1.442695
        %v1088 = vpow.pop %v1087
        %v1089 = vmul.f32 %v967, 1.442695
        %v1090 = vpow.pop %v1089
        %v1091 = vmul.f32 %v968, 1.442695
        %v1092 = vpow.pop %v1091
        %v1093 = vmul.f32 %v969, 1.442695
        %v1094 = vpow.pop %v1093
        %v1095 = vmul.f32 %v970, 1.442695
        %v1096 = vpow.pop %v1095
        %v1097 = vmul.f32 %v971, 1.442695
        %v1098 = vpow.pop %v1097
        %v1099 = vmul.f32 %v972, 1.442695
        %v1100 = vpow.pop %v1099
        %v1101 = vadd.f32 %v974, %v978
        %v1102 = vadd.f32 %v1101, %v982
        %v1103 = vadd.f32 %v1102, %v986
        %v1104 = vadd.f32 %v1103, %v990
        %v1105 = vadd.f32 %v1104, %v994
        %v1106 = vadd.f32 %v1105, %v998
        %v1107 = vadd.f32 %v1106, %v1002
        %v1108 = vadd.f32 %v1107, %v1006
        %v1109 = vadd.f32 %v1108, %v1010
        %v1110 = vadd.f32 %v1109, %v1014
        %v1111 = vadd.f32 %v1110, %v1018
        %v1112 = vadd.f32 %v1111, %v1022
        %v1113 = vadd.f32 %v1112, %v1026
        %v1114 = vadd.f32 %v1113, %v1030
        %v1115 = vadd.f32 %v1114, %v1034
        %v1116 = vadd.f32 %v1115, %v1038
        %v1117 = vadd.f32 %v1116, %v1042
        %v1118 = vadd.f32 %v1117, %v1046
        %v1119 = vadd.f32 %v1118, %v1050
        %v1120 = vadd.f32 %v1119, %v1054
        %v1121 = vadd.f32 %v1120, %v1058
        %v1122 = vadd.f32 %v1121, %v1062
        %v1123 = vadd.f32 %v1122, %v1066
        %v1124 = vadd.f32 %v1123, %v1070
        %v1125 = vadd.f32 %v1124, %v1074
        %v1126 = vadd.f32 %v1125, %v1078
        %v1127 = vadd.f32 %v1126, %v1082
        %v1128 = vadd.f32 %v1127, %v1086
        %v1129 = vadd.f32 %v1128, %v1090
        %v1130 = vadd.f32 %v1129, %v1094
        %v1131 = vadd.f32 %v1130, %v1098
        %v1132 = vrot.slane %v1131, 4
        %v1133 = vadd.f32 %v1131, %v1132
        %v1134 = vrot.slane %v1133, 2
        %v1135 = vadd.f32 %v1133, %v1134
        %v1136 = vrot.slane %v1135, 1
        %v1137 = vadd.f32 %v1135, %v1136
        %v1138 = vadd.f32 %v976, %v980
        %v1139 = vadd.f32 %v1138, %v984
        %v1140 = vadd.f32 %v1139, %v988
        %v1141 = vadd.f32 %v1140, %v992
        %v1142 = vadd.f32 %v1141, %v996
        %v1143 = vadd.f32 %v1142, %v1000
        %v1144 = vadd.f32 %v1143, %v1004
        %v1145 = vadd.f32 %v1144, %v1008
        %v1146 = vadd.f32 %v1145, %v1012
        %v1147 = vadd.f32 %v1146, %v1016
        %v1148 = vadd.f32 %v1147, %v1020
        %v1149 = vadd.f32 %v1148, %v1024
        %v1150 = vadd.f32 %v1149, %v1028
        %v1151 = vadd.f32 %v1150, %v1032
        %v1152 = vadd.f32 %v1151, %v1036
        %v1153 = vadd.f32 %v1152, %v1040
        %v1154 = vadd.f32 %v1153, %v1044
        %v1155 = vadd.f32 %v1154, %v1048
        %v1156 = vadd.f32 %v1155, %v1052
        %v1157 = vadd.f32 %v1156, %v1056
        %v1158 = vadd.f32 %v1157, %v1060
        %v1159 = vadd.f32 %v1158, %v1064
        %v1160 = vadd.f32 %v1159, %v1068
        %v1161 = vadd.f32 %v1160, %v1072
        %v1162 = vadd.f32 %v1161, %v1076
        %v1163 = vadd.f32 %v1162, %v1080
        %v1164 = vadd.f32 %v1163, %v1084
        %v1165 = vadd.f32 %v1164, %v1088
        %v1166 = vadd.f32 %v1165, %v1092
        %v1167 = vadd.f32 %v1166, %v1096
        %v1168 = vadd.f32 %v1167, %v1100
        %v1169 = vrot.slane %v1168, 4
        %v1170 = vadd.f32 %v1168, %v1169
        %v1171 = vrot.slane %v1170, 2
        %v1172 = vadd.f32 %v1170, %v1171
        %v1173 = vrot.slane %v1172, 1
        %v1174 = vadd.f32 %v1172, %v1173
        %v1175 = vrcp.pop %v1137
        %v1176 = vrcp.pop %v1174
        %v1177 = vmul.f32 %v974, %v1175
        %v1178 = vmul.f32 %v976, %v1176
        %v1179 = vmul.f32 %v978, %v1175
        %v1180 = vmul.f32 %v980, %v1176
        %v1181 = vmul.f32 %v982, %v1175
        %v1182 = vmul.f32 %v984, %v1176
        %v1183 = vmul.f32 %v986, %v1175
        %v1184 = vmul.f32 %v988, %v1176
        %v1185 = vmul.f32 %v990, %v1175
        %v1186 = vmul.f32 %v992, %v1176
        %v1187 = vmul.f32 %v994, %v1175
        %v1188 = vmul.f32 %v996, %v1176
        %v1189 = vmul.f32 %v998, %v1175
        %v1190 = vmul.f32 %v1000, %v1176
        %v1191 = vmul.f32 %v1002, %v1175
        %v1192 = vmul.f32 %v1004, %v1176
        %v1193 = vmul.f32 %v1006, %v1175
        %v1194 = vmul.f32 %v1008, %v1176
        %v1195 = vmul.f32 %v1010, %v1175
        %v1196 = vmul.f32 %v1012, %v1176
        %v1197 = vmul.f32 %v1014, %v1175
        %v1198 = vmul.f32 %v1016, %v1176
        %v1199 = vmul.f32 %v1018, %v1175
        %v1200 = vmul.f32 %v1020, %v1176
        %v1201 = vmul.f32 %v1022, %v1175
        %v1202 = vmul.f32 %v1024, %v1176
        %v1203 = vmul.f32 %v1026, %v1175
        %v1204 = vmul.f32 %v1028, %v1176
        %v1205 = vmul.f32 %v1030, %v1175
        %v1206 = vmul.f32 %v1032, %v1176
        %v1207 = vmul.f32 %v1034, %v1175
        %v1208 = vmul.f32 %v1036, %v1176
        %v1209 = vmul.f32 %v1038, %v1175
        %v1210 = vmul.f32 %v1040, %v1176
        %v1211 = vmul.f32 %v1042, %v1175
        %v1212 = vmul.f32 %v1044, %v1176
        %v1213 = vmul.f32 %v1046, %v1175
        %v1214 = vmul.f32 %v1048, %v1176
        %v1215 = vmul.f32 %v1050, %v1175
        %v1216 = vmul.f32 %v1052, %v1176
        %v1217 = vmul.f32 %v1054, %v1175
        %v1218 = vmul.f32 %v1056, %v1176
        %v1219 = vmul.f32 %v1058, %v1175
        %v1220 = vmul.f32 %v1060, %v1176
        %v1221 = vmul.f32 %v1062, %v1175
        %v1222 = vmul.f32 %v1064, %v1176
        %v1223 = vmul.f32 %v1066, %v1175
        %v1224 = vmul.f32 %v1068, %v1176
        %v1225 = vmul.f32 %v1070, %v1175
        %v1226 = vmul.f32 %v1072, %v1176
        %v1227 = vmul.f32 %v1074, %v1175
        %v1228 = vmul.f32 %v1076, %v1176
        %v1229 = vmul.f32 %v1078, %v1175
        %v1230 = vmul.f32 %v1080, %v1176
        %v1231 = vmul.f32 %v1082, %v1175
        %v1232 = vmul.f32 %v1084, %v1176
        %v1233 = vmul.f32 %v1086, %v1175
        %v1234 = vmul.f32 %v1088, %v1176
        %v1235 = vmul.f32 %v1090, %v1175
        %v1236 = vmul.f32 %v1092, %v1176
        %v1237 = vmul.f32 %v1094, %v1175
        %v1238 = vmul.f32 %v1096, %v1176
        %v1239 = vmul.f32 %v1098, %v1175
        %v1240 = vmul.f32 %v1100, %v1176
        %v1241 = vpack.c.bf16 %v437, %v437
        %v1242 = vpack.c.bf16 %v439, %v439
        %v1243 = vpack.c.bf16 %v1179, %v1177
        %v1244 = vpack.c.bf16 %v1180, %v1178
        %v1245 = vpack.c.bf16 %v1183, %v1181
        %v1246 = vpack.c.bf16 %v1184, %v1182
        %v1247 = vpack.c.bf16 %v1187, %v1185
        %v1248 = vpack.c.bf16 %v1188, %v1186
        %v1249 = vpack.c.bf16 %v1191, %v1189
        %v1250 = vpack.c.bf16 %v1192, %v1190
        %v1251 = vpack.c.bf16 %v1195, %v1193
        %v1252 = vpack.c.bf16 %v1196, %v1194
        %v1253 = vpack.c.bf16 %v1199, %v1197
        %v1254 = vpack.c.bf16 %v1200, %v1198
        %v1255 = vpack.c.bf16 %v1203, %v1201
        %v1256 = vpack.c.bf16 %v1204, %v1202
        %v1257 = vpack.c.bf16 %v1207, %v1205
        %v1258 = vpack.c.bf16 %v1208, %v1206
        %v1259 = vpack.c.bf16 %v1211, %v1209
        %v1260 = vpack.c.bf16 %v1212, %v1210
        %v1261 = vpack.c.bf16 %v1215, %v1213
        %v1262 = vpack.c.bf16 %v1216, %v1214
        %v1263 = vpack.c.bf16 %v1219, %v1217
        %v1264 = vpack.c.bf16 %v1220, %v1218
        %v1265 = vpack.c.bf16 %v1223, %v1221
        %v1266 = vpack.c.bf16 %v1224, %v1222
        %v1267 = vpack.c.bf16 %v1227, %v1225
        %v1268 = vpack.c.bf16 %v1228, %v1226
        %v1269 = vpack.c.bf16 %v1231, %v1229
        %v1270 = vpack.c.bf16 %v1232, %v1230
        %v1271 = vpack.c.bf16 %v1235, %v1233
        %v1272 = vpack.c.bf16 %v1236, %v1234
        %v1273 = vpack.c.bf16 %v1239, %v1237
        %v1274 = vpack.c.bf16 %v1240, %v1238
        %1275 = vmatprep.subr.bf16.mxu0 %v1244
        %1276 = vmatpush1.bf16.msra.mxu0 %v1243
        %1277 = vmatprep.subr.bf16.mxu0 %v1246
        %1278 = vmatpush1.bf16.msra.mxu0 %v1245
        %1279 = vmatprep.subr.bf16.mxu0 %v1248
        %1280 = vmatpush1.bf16.msra.mxu0 %v1247
        %1281 = vmatprep.subr.bf16.mxu0 %v1250
        %1282 = vmatpush1.bf16.msra.mxu0 %v1249
        %1283 = vmatprep.subr.bf16.mxu0 %v1252
        %1284 = vmatpush1.bf16.msra.mxu0 %v1251
        %1285 = vmatprep.subr.bf16.mxu0 %v1254
        %1286 = vmatpush1.bf16.msra.mxu0 %v1253
        %1287 = vmatprep.subr.bf16.mxu0 %v1256
        %1288 = vmatpush1.bf16.msra.mxu0 %v1255
        %1289 = vmatprep.subr.bf16.mxu0 %v1258
        %1290 = vmatpush1.bf16.msra.mxu0 %v1257
        %1291 = vmatprep.subr.bf16.mxu0 %v1260
        %1292 = vmatpush1.bf16.msra.mxu0 %v1259
        %1293 = vmatprep.subr.bf16.mxu0 %v1262
        %1294 = vmatpush1.bf16.msra.mxu0 %v1261
        %1295 = vmatprep.subr.bf16.mxu0 %v1264
        %1296 = vmatpush1.bf16.msra.mxu0 %v1263
        %1297 = vmatprep.subr.bf16.mxu0 %v1266
        %1298 = vmatpush1.bf16.msra.mxu0 %v1265
        %1299 = vmatprep.subr.bf16.mxu0 %v1268
        %1300 = vmatpush1.bf16.msra.mxu0 %v1267
        %1301 = vmatprep.subr.bf16.mxu0 %v1270
        %1302 = vmatpush1.bf16.msra.mxu0 %v1269
        %1303 = vmatprep.subr.bf16.mxu0 %v1272
        %1304 = vmatpush1.bf16.msra.mxu0 %v1271
        %1305 = vmatprep.subr.bf16.mxu0 %v1274
        %1306 = vmatpush1.bf16.msra.mxu0 %v1273
        %1307 = vmatprep.mubr.bf16.mxu0 %v1242
        %1308 = vmatmul.mubr.bf16.gmra.mrb[0].mxu0 %v1241
        %v1309 = vpop.f32.mrb[0].mxu0
        %v1310 = vadd.f32 0.0, %v1309
        %v1311 = vpop.f32.mrb[0].mxu0
        %v1312 = vadd.f32 0.0, %v1311
        %v1313 = vpop.f32.mrb[0].mxu0
        %v1314 = vpop.f32.mrb[0].mxu0
        %1315 = vdwg.mxu0
        %1316 = vst [vmem:[%s190] sm:$0xff] %v1310
        %1317 = vst [vmem:[%s190 + $0x8] sm:$0xff] %v1312
        %s1318 = sand.u32 %s115, 1
        %s1319 = scalar_lea.sflag [#allocation3], %s1318
        %s1320 = sand.u32 %s115, 1
        %s1321 = smul.addr %s1320, 16
        %s1322 = scalar_lea.vmem [#allocation2], %s1321
        // Predicated region
        $region37: #{tpu_custom_call.1} parent=35 // pred_check
          %p1323 = pneg %p125
        $region38: #{tpu_custom_call.1} parent=35 // pred_check_branch
          %1325 = sbr.rel (%p1323) target = $region40
        $region39: #{tpu_custom_call.1} parent=35 // pred_region
          %s1327 = ssub.s32 256, 256
          %1328 = vsyncadd %s1319, %s1327
          %s1329 = smul.addr %s18, 2
          %s1330 = smul.addr %s1329, 128
          %s1331 = scalar_lea.hbm %s4, %s1330
          %s1333 = sshll.u32 %s1322, 4
          %s1334 = int_to_ptr.vmem [resolvable:$true] %s1333
          %1336 = dma.vmem_to_hbm [thread:$0]  %s1334, 256, %s1331, %s1319
        $region40: #{tpu_custom_call.1} parent=35 // pred_fallthru
          _
      $region36: #{tpu_custom_call.1} parent=5 // pred_fallthru
        _
      %p1337 = scmp.le.s32.totalorder 2, %s13
      // Predicated region
      $region41: #{tpu_custom_call.1} parent=5 // pred_check
        %p1338 = pneg %p1337
      $region42: #{tpu_custom_call.1} parent=5 // pred_check_branch
        %1340 = sbr.rel (%p1338) target = $region44
      $region43: #{tpu_custom_call.1} parent=5 // pred_region
        %s1341 = ssub.s32 %s13, 2
        // Predicated region
        $region45: #{tpu_custom_call.1} parent=43 // pred_check
          %p1342 = pneg %p131
        $region46: #{tpu_custom_call.1} parent=43 // pred_check_branch
          %1344 = sbr.rel (%p1342) target = $region48
        $region47: #{tpu_custom_call.1} parent=43 // pred_region
          %s1345 = sand.u32 %s116, 1
          %s1346 = scalar_lea.sflag [#allocation3], %s1345
          %s1347 = sand.u32 %s116, 1
          %s1348 = smul.addr %s1347, 16
          %s1349 = scalar_lea.vmem [#allocation2], %s1348
          %1350 = dma.done %s1346, 256
        $region48: #{tpu_custom_call.1} parent=43 // pred_fallthru
          _
      $region44: #{tpu_custom_call.1} parent=5 // pred_fallthru
        _
    $region6: #{tpu_custom_call.1} parent=1 // loop_footer
      %s17 = sadd.s32 1, %s13
    $region7: #{tpu_custom_call.1} parent=1 // loop_footer_branch
      %12 = sbr.rel target = $region3
    $region8: #{tpu_custom_call.1} parent=1 // loop_exit
      _
    %1351 = vsyncpa [#allocation3], 1
    %s1352 = scalar_lea.sflag [#allocation3], 1
    %1353 = vsyncpa %s1352, 1

</llo_original>
